<compile_context>
chip_gen: v7x
topology: tpu7x:2x2x1
jax: 0.10.0
libtpu: 0.0.40
codegen_flags: <defaults>
</compile_context>

<pallas_src>
import functools

import jax
import jax.numpy as jnp
from jax import lax
from jax.experimental import pallas as pl
from jax.experimental.pallas import tpu as pltpu


def _round_up(n: int, m: int) -> int:
    return ((n + m - 1) // m) * m


# x:(b,d) contracted with w:(c,d) on d  ->  (b,c)   (transposed-RHS matmul)
_CONTRACT_DIMS = (((1,), (1,)), ((), ()))

_VMEM_BUDGET = 44 * 1024 * 1024   # decision budget (v7x has only 64 MiB VMEM)
_VMEM_LIMIT = 56 * 1024 * 1024    # explicit scoped-VMEM cap passed to Mosaic


# ---------------------------------------------------------------------------
# Fast path: weight + bias fully VMEM-resident, 1-D grid over the batch only.
# ---------------------------------------------------------------------------
def _resident_kernel(x_ref, w_ref, b_ref, o_ref):
    acc = lax.dot_general(x_ref[...], w_ref[...], _CONTRACT_DIMS,
                          preferred_element_type=jnp.float32)
    o_ref[...] = (acc + b_ref[...].astype(jnp.float32)).astype(o_ref.dtype)


# ---------------------------------------------------------------------------
# Fallback path: 3-D grid (i over batch, j over classes, k over reduction).
# ---------------------------------------------------------------------------
def _tiled_kernel(x_ref, w_ref, b_ref, o_ref, acc_ref):
    k = pl.program_id(2)
    prod = lax.dot_general(x_ref[...], w_ref[...], _CONTRACT_DIMS,
                           preferred_element_type=jnp.float32)

    @pl.when(k == 0)
    def _first():
        acc_ref[...] = prod                       # overwrite: no zero-fill pass

    @pl.when(k > 0)
    def _accum():
        acc_ref[...] += prod

    @pl.when(k == pl.num_programs(2) - 1)
    def _finalize():
        o_ref[...] = (acc_ref[...] + b_ref[...].astype(jnp.float32)
                      ).astype(o_ref.dtype)


def _resident_need_bytes(tb, D, C, in_item, out_item):
    # Every BlockSpec input is double-buffered.
    return in_item * (2 * tb * D + 2 * C * D) + out_item * 2 * tb * C + 8 * C


@functools.partial(jax.jit, static_argnames=("use_bf16", "_force_tiled"))
def logistic_regression_forward(x, weight, bias, *, use_bf16: bool = False,
                                _force_tiled: bool = False):
    """y = x @ weight.T + bias   (exact torch.nn.Linear forward semantics)."""
    B, D = x.shape
    C, D2 = weight.shape
    assert D == D2 and bias.shape == (C,)
    out_dtype = x.dtype

    if use_bf16:                      # halves the dominant x HBM stream; f32 acc kept
        x = x.astype(jnp.bfloat16)
        weight = weight.astype(jnp.bfloat16)
    in_item = jnp.dtype(x.dtype).itemsize
    out_item = jnp.dtype(out_dtype).itemsize

    bias2d = bias.reshape(1, C)       # lane-dense (1, C); free reshape

    # ---- batch tile: single full-B step when small, 512-row tiles otherwise
    #      (>= 2 parallel steps for B > 512 so v7x's second TC gets work). ----
    tb = B if B <= 512 else 512

    # ---- resident-weight fast path ------------------------------------------
    tb_res = tb
    while tb_res > 8 and _resident_need_bytes(tb_res, D, C, in_item,
                                              out_item) > _VMEM_BUDGET:
        tb_res = max(8, _round_up(tb_res // 2, 8))

    if (not _force_tiled and
            _resident_need_bytes(tb_res, D, C, in_item, out_item) <= _VMEM_BUDGET):
        tb = tb_res
        return pl.pallas_call(
            _resident_kernel,
            out_shape=jax.ShapeDtypeStruct((B, C), out_dtype),
            grid_spec=pltpu.PrefetchScalarGridSpec(
                num_scalar_prefetch=0,
                grid=(pl.cdiv(B, tb),),
                in_specs=[
                    pl.BlockSpec((tb, D), lambda i: (i, 0)),   # x streams
                    pl.BlockSpec((C, D), lambda i: (0, 0)),    # weight resident
                    pl.BlockSpec((1, C), lambda i: (0, 0)),    # bias resident
                ],
                out_specs=pl.BlockSpec((tb, C), lambda i: (i, 0)),
            ),
            compiler_params=pltpu.CompilerParams(
                dimension_semantics=("parallel",),
                vmem_limit_bytes=_VMEM_LIMIT,
            ),
        )(x, weight, bias2d)

    # ---- general tiled path (weight too large to keep resident) -------------
    # Class tile: 256 for the v6e/v7x 2x256x256 MXU; full-C when C is small.
    if C < 128:
        tn = C
    elif C < 256:
        tn = 128
    else:
        tn = 256

    # Reduction tile: multiple of 128, ~512 target, balanced so tk*nk wastes
    # as little zero padding as possible (only D ever needs padding).
    d128 = _round_up(D, 128)
    nk = pl.cdiv(d128, 512)
    tk = _round_up(pl.cdiv(d128, nk), 128)
    Dp = tk * nk
    if Dp > D:                         # zero pad is exact for the contraction
        x = jnp.pad(x, ((0, 0), (0, Dp - D)))
        weight = jnp.pad(weight, ((0, 0), (0, Dp - D)))

    grid = (pl.cdiv(B, tb), pl.cdiv(C, tn), nk)
    return pl.pallas_call(
        _tiled_kernel,
        out_shape=jax.ShapeDtypeStruct((B, C), out_dtype),
        grid_spec=pltpu.PrefetchScalarGridSpec(
            num_scalar_prefetch=0,
            grid=grid,
            in_specs=[
                pl.BlockSpec((tb, tk), lambda i, j, k: (i, k)),   # x tile
                pl.BlockSpec((tn, tk), lambda i, j, k: (j, k)),   # w tile, (C,D) layout
                pl.BlockSpec((1, tn), lambda i, j, k: (0, j)),    # bias, pinned over k
            ],
            out_specs=pl.BlockSpec((tb, tn), lambda i, j, k: (i, j)),
            scratch_shapes=[pltpu.VMEM((tb, tn), jnp.float32)],
        ),
        compiler_params=pltpu.CompilerParams(
            dimension_semantics=("parallel", "parallel", "arbitrary"),
            vmem_limit_bytes=_VMEM_LIMIT,
        ),
    )(x, weight, bias2d)


def _reference(x, weight, bias):
    return jnp.dot(x, weight.T, precision=jax.lax.Precision.HIGHEST) + bias


if __name__ == "__main__":
    key = jax.random.PRNGKey(0)

    # --- test 1: small shapes consistent with the module (resident path) ----
    batch, input_dim, nb_classes = 8, 32, 16
    k1, k2, k3, k4, k5, k6 = jax.random.split(key, 6)
    bound = 1.0 / (input_dim ** 0.5)
    x = jax.random.normal(k1, (batch, input_dim), dtype=jnp.float32)
    weight = jax.random.uniform(k2, (nb_classes, input_dim),
                                minval=-bound, maxval=bound, dtype=jnp.float32)
    bias = jax.random.uniform(k3, (nb_classes,),
                              minval=-bound, maxval=bound, dtype=jnp.float32)

    out = jax.block_until_ready(logistic_regression_forward(x, weight, bias))
    assert out.shape == (batch, nb_classes)
    assert jnp.allclose(out, _reference(x, weight, bias), atol=1e-4, rtol=1e-4)

    # --- test 2: exercise the multi-tile / multi-k fallback path -------------
    B2, D2, C2 = 530, 700, 150            # partial edge blocks + 2 k-steps
    bound2 = 1.0 / (D2 ** 0.5)
    x2 = jax.random.normal(k4, (B2, D2), dtype=jnp.float32)
    w2 = jax.random.uniform(k5, (C2, D2), minval=-bound2, maxval=bound2,
                            dtype=jnp.float32)
    b2 = jax.random.uniform(k6, (C2,), minval=-bound2, maxval=bound2,
                            dtype=jnp.float32)
    out2 = jax.block_until_ready(
        logistic_regression_forward(x2, w2, b2, _force_tiled=True))
    assert out2.shape == (B2, C2)
    assert jnp.allclose(out2, _reference(x2, w2, b2), atol=2e-4, rtol=1e-4)

    print("KERNEL_OK")
</pallas_src>

<mosaic_0001>
module attributes {stable_mosaic.version = 11 : i64} {
  func.func @_resident_kernel(%arg0: i32, %arg1: memref<8x32xf32, #tpu.memory_space<vmem>>, %arg2: memref<16x32xf32, #tpu.memory_space<vmem>>, %arg3: memref<1x16xf32, #tpu.memory_space<vmem>>, %arg4: memref<8x16xf32, #tpu.memory_space<vmem>>) attributes {dimension_semantics = [#tpu.dimension_semantics<parallel>], iteration_bounds = array<i64: 1>, scalar_prefetch = 0 : i64, scratch_operands = 0 : i64, tpu.core_type = #tpu.core_type<tc>, window_params = [{transform_indices = @transform_0, window_bounds = array<i64: 8, 32>}, {pipeline_mode = #tpu.pipeline_mode<synchronous>, transform_indices = @transform_1, window_bounds = array<i64: 16, 32>}, {pipeline_mode = #tpu.pipeline_mode<synchronous>, transform_indices = @transform_2, window_bounds = array<i64: 1, 16>}, {transform_indices = @transform_3, window_bounds = array<i64: 8, 16>}]} {
    %c0 = arith.constant 0 : index
    %c0_0 = arith.constant 0 : index
    %0 = vector.load %arg1[%c0, %c0_0] : memref<8x32xf32, #tpu.memory_space<vmem>>, vector<8x32xf32>
    %c0_1 = arith.constant 0 : index
    %c0_2 = arith.constant 0 : index
    %1 = vector.load %arg2[%c0_1, %c0_2] : memref<16x32xf32, #tpu.memory_space<vmem>>, vector<16x32xf32>
    %cst = arith.constant dense<0.000000e+00> : vector<8x16xf32>
    %2 = tpu.matmul %0, %1, %cst {dimension_numbers = #tpu.dot_dimension_numbers<[1], [1], [0], [0], [0, 0, 1, 0], [], []>} : vector<8x32xf32>, vector<16x32xf32>, vector<8x16xf32> -> vector<8x16xf32>
    %c0_3 = arith.constant 0 : index
    %c0_4 = arith.constant 0 : index
    %3 = vector.load %arg3[%c0_3, %c0_4] : memref<1x16xf32, #tpu.memory_space<vmem>>, vector<1x16xf32>
    %4 = vector.broadcast %3 : vector<1x16xf32> to vector<8x16xf32>
    %5 = arith.addf %2, %4 : vector<8x16xf32>
    %c0_5 = arith.constant 0 : index
    %c0_6 = arith.constant 0 : index
    %6 = vector.load %arg4[%c0_5, %c0_6] : memref<8x16xf32, #tpu.memory_space<vmem>>, vector<8x16xf32>
    tpu.vector_store %arg4[%c0_5, %c0_6], %5 {strides = array<i32>} : memref<8x16xf32, #tpu.memory_space<vmem>>, vector<8x16xf32>,
    return
  }
  func.func @transform_0(%arg0: i32) -> (i32, i32) {
    %c0_i32 = arith.constant 0 : i32
    %c0_i32_0 = arith.constant 0 : i32
    return %arg0, %c0_i32 : i32, i32
  }
  func.func @transform_1(%arg0: i32) -> (i32, i32) {
    %c0_i32 = arith.constant 0 : i32
    %c0_i32_0 = arith.constant 0 : i32
    %c0_i32_1 = arith.constant 0 : i32
    return %c0_i32, %c0_i32_0 : i32, i32
  }
  func.func @transform_2(%arg0: i32) -> (i32, i32) {
    %c0_i32 = arith.constant 0 : i32
    %c0_i32_0 = arith.constant 0 : i32
    %c0_i32_1 = arith.constant 0 : i32
    return %c0_i32, %c0_i32_0 : i32, i32
  }
  func.func @transform_3(%arg0: i32) -> (i32, i32) {
    %c0_i32 = arith.constant 0 : i32
    %c0_i32_0 = arith.constant 0 : i32
    return %arg0, %c0_i32 : i32, i32
  }
}

</mosaic_0001>

<llo_original>
// kernel: logistic_regression_forward.1
$region0: #{logistic_regression_forward.1}
  #allocation0 [shape = 'u32[]', space=smem, size = 0x4, offset = 0x4, fixed_abs, tag = 'smem constant byte address 0x4 - core index']
  #allocation1 [shape = 'u32[144,128]{1,0:T(1,128)}', space=vmem, size = 0x12000, scoped, tag = 'internal scratch']
  %s0 = inlined_call_operand.hbm [shape: f32[8,32], index: 0, kind: input, shape index: {}]
  %s1 = inlined_call_operand.hbm [shape: f32[16,32], index: 1, kind: input, shape index: {}]
  %s2 = inlined_call_operand.vmem [shape: f32[1,16], index: 2, kind: input, shape index: {}]
  %s3 = inlined_call_operand.hbm [shape: f32[8,16], index: 3, kind: output, shape index: {}]
  %s4 = sld [smem:[#allocation0]]
  $region30: #{logistic_regression_forward.1} parent=0
    _
  %s6 = ssub.s32 1, %s4
  %s7 = scalar_select 0, %s6, %s4
  $region1: #{logistic_regression_forward.1} parent=0
    #allocation2 [shape = 'u8[4096]{0}', space=vmem, size = 0x1000, scoped, tag = 'input window, operand 0, single buffered']
    #allocation3 [shape = 's32[1]{0}', space=sflag, size = 0x4, scoped, tag = 'scoped memory for logistic_regression_forward.1']
    #allocation4 [shape = 's32[1]{0}', space=sflag, size = 0x4, scoped, tag = 'scoped memory for logistic_regression_forward.1']
    #allocation5 [shape = 'u8[8192]{0}', space=vmem, size = 0x2000, scoped, tag = 'input window, operand 1, single buffered']
    #allocation6 [shape = 's32[1]{0}', space=sflag, size = 0x4, scoped, tag = 'scoped memory for logistic_regression_forward.1']
    #allocation7 [shape = 'u8[4096]{0}', space=vmem, size = 0x1000, scoped, tag = 'output window, operand 0, single buffered']
    %8 = vsyncpa [#allocation3], 0
    %9 = vsyncpa [#allocation6], 0
    %10 = vsyncpa [#allocation4], 0
    // Predicated region
    $region2: #{logistic_regression_forward.1} parent=1 // pred_check
      _
    $region3: #{logistic_regression_forward.1} parent=1 // pred_check_branch
      %12 = sbr.rel (0) target = $region5
    $region4: #{logistic_regression_forward.1} parent=1 // pred_region
      %s14 = ssub.s32 128, 128
      %15 = vsyncadd [#allocation3], %s14
      %s17 = sshll.u32 [#allocation2], 4
      %s18 = int_to_ptr.vmem [resolvable:$true] %s17
      %20 = dma.hbm_to_vmem [thread:$0]  %s0, 128, %s18, [#allocation3]
    $region5: #{logistic_regression_forward.1} parent=1 // pred_fallthru
      _
    // Predicated region
    $region6: #{logistic_regression_forward.1} parent=1 // pred_check
      _
    $region7: #{logistic_regression_forward.1} parent=1 // pred_check_branch
      %22 = sbr.rel (0) target = $region9
    $region8: #{logistic_regression_forward.1} parent=1 // pred_region
      %s24 = ssub.s32 256, 256
      %25 = vsyncadd [#allocation6], %s24
      %s26 = sshll.u32 [#allocation5], 4
      %s27 = int_to_ptr.vmem [resolvable:$true] %s26
      %32 = dma.hbm_to_vmem [thread:$0]  %s1, 256, %s27, [#allocation6], 128, 128, 8
    $region9: #{logistic_regression_forward.1} parent=1 // pred_fallthru
      _
    // Predicated region
    $region10: #{logistic_regression_forward.1} parent=1 // pred_check
      _
    $region11: #{logistic_regression_forward.1} parent=1 // pred_check_branch
      %34 = sbr.rel (0) target = $region13
    $region12: #{logistic_regression_forward.1} parent=1 // pred_region
      _
    $region13: #{logistic_regression_forward.1} parent=1 // pred_fallthru
      _
    // Predicated region
    $region14: #{logistic_regression_forward.1} parent=1 // pred_check
      _
    $region15: #{logistic_regression_forward.1} parent=1 // pred_check_branch
      %36 = sbr.rel (0) target = $region17
    $region16: #{logistic_regression_forward.1} parent=1 // pred_region
      %37 = dma.done [#allocation3], 128
    $region17: #{logistic_regression_forward.1} parent=1 // pred_fallthru
      _
    // Predicated region
    $region18: #{logistic_regression_forward.1} parent=1 // pred_check
      _
    $region19: #{logistic_regression_forward.1} parent=1 // pred_check_branch
      %39 = sbr.rel (0) target = $region21
    $region20: #{logistic_regression_forward.1} parent=1 // pred_region
      %40 = dma.done [#allocation6], 256
    $region21: #{logistic_regression_forward.1} parent=1 // pred_fallthru
      _
    %v41 = vld [vmem:[#allocation2] sm:$0xff]
    %v42 = vld [vmem:[#allocation5] sm:$0xff]
    %v43 = vld [vmem:[#allocation5 + $0x8] sm:$0xff]
    %v44 = vld [vmem:[%s2] sm:$0x1]
    %v46 = vlaneseq
    %v47 = vshrl.u32 %v46, 7
    %v48 = vsub.s32 0, %v47
    %v49 = vrot.slane %v44, %v48
    %vm51 = vcmask 261120
    %v53 = vsel %vm51, %v41, 0
    %v56 = vsel %vm51, %v42, 0
    %v59 = vsel %vm51, %v43, 0
    %61 = vmatprep.subr.mxu0 0.0
    %62 = vmatpush1.xpose.msra.mxu0 %v56
    %63 = vmatprep.subr.mxu0 0.0
    %64 = vmatpush1.xpose.msra.mxu0 %v59
    %65 = vmatprep.subr.mxu0 0.0
    %66 = vmatpush1.xpose.msra.mxu0 0.0
    %67 = vmatprep.subr.mxu0 0.0
    %68 = vmatpush1.xpose.msra.mxu0 0.0
    %69 = vmatprep.subr.mxu0 0.0
    %70 = vmatpush1.xpose.msra.mxu0 0.0
    %71 = vmatprep.subr.mxu0 0.0
    %72 = vmatpush1.xpose.msra.mxu0 0.0
    %73 = vmatprep.subr.mxu0 0.0
    %74 = vmatpush1.xpose.msra.mxu0 0.0
    %75 = vmatprep.subr.mxu0 0.0
    %76 = vmatpush1.xpose.msra.mxu0 0.0
    %77 = vmatprep.subr.mxu0 0.0
    %78 = vmatpush1.xpose.msra.mxu0 0.0
    %79 = vmatprep.subr.mxu0 0.0
    %80 = vmatpush1.xpose.msra.mxu0 0.0
    %81 = vmatprep.subr.mxu0 0.0
    %82 = vmatpush1.xpose.msra.mxu0 0.0
    %83 = vmatprep.subr.mxu0 0.0
    %84 = vmatpush1.xpose.msra.mxu0 0.0
    %85 = vmatprep.subr.mxu0 0.0
    %86 = vmatpush1.xpose.msra.mxu0 0.0
    %87 = vmatprep.subr.mxu0 0.0
    %88 = vmatpush1.xpose.msra.mxu0 0.0
    %89 = vmatprep.subr.mxu0 0.0
    %90 = vmatpush1.xpose.msra.mxu0 0.0
    %91 = vmatprep.subr.mxu0 0.0
    %92 = vmatpush1.xpose.msra.mxu0 0.0
    %93 = vmatprep.subr.mxu0 0.0
    %94 = vmatpush1.xpose.msra.mxu0 0.0
    %95 = vmatprep.subr.mxu0 0.0
    %96 = vmatpush1.xpose.msra.mxu0 0.0
    %97 = vmatprep.subr.mxu0 0.0
    %98 = vmatpush1.xpose.msra.mxu0 0.0
    %99 = vmatprep.subr.mxu0 0.0
    %100 = vmatpush1.xpose.msra.mxu0 0.0
    %101 = vmatprep.subr.mxu0 0.0
    %102 = vmatpush1.xpose.msra.mxu0 0.0
    %103 = vmatprep.subr.mxu0 0.0
    %104 = vmatpush1.xpose.msra.mxu0 0.0
    %105 = vmatprep.subr.mxu0 0.0
    %106 = vmatpush1.xpose.msra.mxu0 0.0
    %107 = vmatprep.subr.mxu0 0.0
    %108 = vmatpush1.xpose.msra.mxu0 0.0
    %109 = vmatprep.subr.mxu0 0.0
    %110 = vmatpush1.xpose.msra.mxu0 0.0
    %111 = vmatprep.subr.mxu0 0.0
    %112 = vmatpush1.xpose.msra.mxu0 0.0
    %113 = vmatprep.subr.mxu0 0.0
    %114 = vmatpush1.xpose.msra.mxu0 0.0
    %115 = vmatprep.subr.mxu0 0.0
    %116 = vmatpush1.xpose.msra.mxu0 0.0
    %117 = vmatprep.subr.mxu0 0.0
    %118 = vmatpush1.xpose.msra.mxu0 0.0
    %119 = vmatprep.subr.mxu0 0.0
    %120 = vmatpush1.xpose.msra.mxu0 0.0
    %121 = vmatprep.subr.mxu0 0.0
    %122 = vmatpush1.xpose.msra.mxu0 0.0
    %123 = vmatprep.subr.mxu0 0.0
    %124 = vmatpush1.xpose.msra.mxu0 0.0
    %125 = vmatprep.mubr.f32.mxu0 0.0
    %126 = vmatmul.mubr.f32.gmra.mrb[0].mxu0 %v53
    %v127 = vpop.f32.mrb[0].mxu0
    %v128 = vadd.f32 %v49, %v127
    %v129 = vpop.f32.mrb[0].mxu0
    %130 = vdwg.mxu0
    %vm131 = vcmask 130048
    %132 = vst.msk [vmem:[#allocation7] sm:$0xff] %vm131, %v128
    // Predicated region
    $region22: #{logistic_regression_forward.1} parent=1 // pred_check
      _
    $region23: #{logistic_regression_forward.1} parent=1 // pred_check_branch
      %134 = sbr.rel (0) target = $region25
    $region24: #{logistic_regression_forward.1} parent=1 // pred_region
      %s136 = ssub.s32 128, 128
      %137 = vsyncadd [#allocation4], %s136
      %s139 = sshll.u32 [#allocation7], 4
      %s140 = int_to_ptr.vmem [resolvable:$true] %s139
      %142 = dma.vmem_to_hbm [thread:$0]  %s140, 128, %s3, [#allocation4]
    $region25: #{logistic_regression_forward.1} parent=1 // pred_fallthru
      _
    // Predicated region
    $region26: #{logistic_regression_forward.1} parent=1 // pred_check
      _
    $region27: #{logistic_regression_forward.1} parent=1 // pred_check_branch
      %144 = sbr.rel (0) target = $region29
    $region28: #{logistic_regression_forward.1} parent=1 // pred_region
      %145 = dma.done [#allocation4], 128
    $region29: #{logistic_regression_forward.1} parent=1 // pred_fallthru
      _
    %146 = vsyncpa [#allocation3], 1
    %147 = vsyncpa [#allocation6], 1
    %148 = vsyncpa [#allocation4], 1

</llo_original>
